<compile_context>
chip_gen: v6e
topology: v6e:2x2x1
jax: 0.10.0
libtpu: 0.0.40
codegen_flags: <defaults>
</compile_context>

<pallas_src>
import functools

import jax
import jax.numpy as jnp
from jax.experimental import pallas as pl
from jax.experimental.pallas import tpu as pltpu

IN_FEATURES = 8
HIDDEN = (16, 24, 32, 36)
NUM_CLASSES = 6
BN_EPS = 1e-5
LANE = 128


def _round_up(n, m):
    return ((n + m - 1) // m) * m


def _cdiv(a, b):
    return -(-a // b)


def mlp_kernel(
    x_ref,
    w1_ref, b1_ref,
    w2_ref, b2_ref,
    w3_ref, b3_ref,
    w4_ref, b4_ref,
    w5_ref, b5_ref,
    o_ref,
):
    """One (8, TB) transposed batch tile -> (NUM_CLASSES, TB) logits.

    BN is already folded into the weights/biases. Weights are (out, in),
    biases are (out, 1) and broadcast over the lane (batch) axis.
    """

    def lin(h, w_ref, b_ref):
        z = jnp.dot(w_ref[...], h, preferred_element_type=jnp.float32)
        return z + b_ref[...]

    h = x_ref[...]                                   # (8,  TB)
    h = jnp.maximum(lin(h, w1_ref, b1_ref), 0.0)     # (16, TB)
    h = jnp.maximum(lin(h, w2_ref, b2_ref), 0.0)     # (24, TB)
    h = jnp.maximum(lin(h, w3_ref, b3_ref), 0.0)     # (32, TB)
    h = jnp.maximum(lin(h, w4_ref, b4_ref), 0.0)     # (36, TB)
    o_ref[...] = lin(h, w5_ref, b5_ref)              # (6,  TB)  lane-dense store


def init_params(key):
    """Deterministic synthetic parameters matching the module's shapes.

    Weights are stored torch-native (out, in); biases / BN stats as (out, 1).
    """
    dims = (IN_FEATURES,) + HIDDEN + (NUM_CLASSES,)
    params = {}
    keys = jax.random.split(key, 6 * (len(dims) - 1))
    k = 0
    for i in range(len(dims) - 1):
        fan_in, fan_out = dims[i], dims[i + 1]
        limit = 1.0 / jnp.sqrt(fan_in)
        params[f"w{i+1}"] = jax.random.uniform(
            keys[k], (fan_out, fan_in), jnp.float32, -limit, limit
        )
        params[f"b{i+1}"] = jax.random.uniform(
            keys[k + 1], (fan_out, 1), jnp.float32, -limit, limit
        )
        if i < len(dims) - 2:  # BatchNorm1d after all but the last Linear
            gamma = 1.0 + 0.05 * jax.random.normal(keys[k + 2], (fan_out, 1), jnp.float32)
            beta = 0.05 * jax.random.normal(keys[k + 3], (fan_out, 1), jnp.float32)
            run_mean = 0.1 * jax.random.normal(keys[k + 4], (fan_out, 1), jnp.float32)
            run_var = jnp.abs(
                1.0 + 0.1 * jax.random.normal(keys[k + 5], (fan_out, 1), jnp.float32)
            )
            scale = gamma / jnp.sqrt(run_var + BN_EPS)
            shift = beta - run_mean * scale
            params[f"s{i+1}"] = scale
            params[f"t{i+1}"] = shift
        k += 6
    return params


def fold_batchnorm(params):
    """One-time constant fold of the BN affine into the preceding Linear."""
    folded = {}
    for i in range(1, 5):
        s = params[f"s{i}"]          # (out, 1) scales rows of the (out, in) weight
        t = params[f"t{i}"]
        folded[f"w{i}"] = params[f"w{i}"] * s
        folded[f"b{i}"] = params[f"b{i}"] * s + t
    folded["w5"] = params["w5"]
    folded["b5"] = params["b5"]
    return folded


@functools.partial(jax.jit, static_argnames=("max_tb",))
def failure_type_prediction_forward(x, folded_params, max_tb=1024):
    """x: (N, 8) float32 -> logits (N, NUM_CLASSES). folded_params from fold_batchnorm."""
    n = x.shape[0]

    # Balanced lane-multiple tiling:
    #  * nblocks = ceil(n / max_tb), but force >=2 blocks once n >= 256 so the
    #    "parallel" grid axis actually shards across v7x's two TensorCores
    #    (no effect / no harm on single-TC v5e/v6e).
    #  * tb = ceil(n / nblocks) rounded up to 128 lanes -> padding stays small
    #    (no blow-up to a full extra max_tb tile at awkward N).
    nblocks = max(1, _cdiv(max(n, 1), max_tb))
    if nblocks == 1 and n >= 2 * LANE:
        nblocks = 2
    tb = _round_up(_cdiv(max(n, 1), nblocks), LANE)
    n_pad = tb * nblocks

    # Batch-on-lanes: transpose once in the wrapper (cheap XLA op), pad lanes.
    x_t = x.T                                    # (8, N)
    if n_pad != n:
        x_t = jnp.pad(x_t, ((0, 0), (0, n_pad - n)))

    p = folded_params
    weight_args = (
        p["w1"], p["b1"],
        p["w2"], p["b2"],
        p["w3"], p["b3"],
        p["w4"], p["b4"],
        p["w5"], p["b5"],
    )

    # Weights/biases: full-shape blocks, constant index_map -> loaded once,
    # resident in VMEM across all grid steps.
    weight_specs = [pl.BlockSpec(w.shape, lambda i: (0, 0)) for w in weight_args]

    out_t = pl.pallas_call(
        mlp_kernel,
        out_shape=jax.ShapeDtypeStruct((NUM_CLASSES, n_pad), jnp.float32),
        grid=(nblocks,),
        in_specs=[pl.BlockSpec((IN_FEATURES, tb), lambda i: (0, i))] + weight_specs,
        out_specs=pl.BlockSpec((NUM_CLASSES, tb), lambda i: (0, i)),
        compiler_params=pltpu.CompilerParams(
            dimension_semantics=("parallel",),   # megacore sharding on v7x
        ),
    )(x_t, *weight_args)

    out = out_t.T                                # (n_pad, NUM_CLASSES)
    if n_pad != n:
        out = out[:n]
    # torch .squeeze(dim=1) is a no-op (NUM_CLASSES=6), so shape stays (N, 6).
    return out


def reference_forward(x, params):
    """Plain-JAX reference (row-major, unfolded BN) for correctness checking."""
    h = x
    for i in range(1, 5):
        h = h @ params[f"w{i}"].T + params[f"b{i}"].T
        h = h * params[f"s{i}"].T + params[f"t{i}"].T
        h = jnp.maximum(h, 0.0)
    return h @ params["w5"].T + params["b5"].T


if __name__ == "__main__":
    key = jax.random.PRNGKey(0)
    k_x, k_x2, k_p = jax.random.split(key, 3)

    params = init_params(k_p)
    folded = fold_batchnorm(params)

    # Small batch: single 128-lane tile (padding path).
    batch = 32
    x = jax.random.normal(k_x, (batch, IN_FEATURES), jnp.float32)
    out = jax.block_until_ready(failure_type_prediction_forward(x, folded))
    ref = reference_forward(x, params)
    assert out.shape == (batch, NUM_CLASSES)
    assert jnp.allclose(out, ref, atol=1e-4, rtol=1e-4)

    # Mid-size batch: exercises the 2-block (megacore-friendly) grid path.
    batch2 = 300
    x2 = jax.random.normal(k_x2, (batch2, IN_FEATURES), jnp.float32)
    out2 = jax.block_until_ready(failure_type_prediction_forward(x2, folded))
    ref2 = reference_forward(x2, params)
    assert out2.shape == (batch2, NUM_CLASSES)
    assert jnp.allclose(out2, ref2, atol=1e-4, rtol=1e-4)

    print("KERNEL_OK")
</pallas_src>

<mosaic_0001>
module attributes {stable_mosaic.version = 11 : i64} {
  func.func @mlp_kernel(%arg0: i32, %arg1: memref<8x128xf32, #tpu.memory_space<vmem>>, %arg2: memref<16x8xf32, #tpu.memory_space<vmem>>, %arg3: memref<16x1xf32, #tpu.memory_space<vmem>>, %arg4: memref<24x16xf32, #tpu.memory_space<vmem>>, %arg5: memref<24x1xf32, #tpu.memory_space<vmem>>, %arg6: memref<32x24xf32, #tpu.memory_space<vmem>>, %arg7: memref<32x1xf32, #tpu.memory_space<vmem>>, %arg8: memref<36x32xf32, #tpu.memory_space<vmem>>, %arg9: memref<36x1xf32, #tpu.memory_space<vmem>>, %arg10: memref<6x36xf32, #tpu.memory_space<vmem>>, %arg11: memref<6x1xf32, #tpu.memory_space<vmem>>, %arg12: memref<6x128xf32, #tpu.memory_space<vmem>>) attributes {dimension_semantics = [#tpu.dimension_semantics<parallel>], iteration_bounds = array<i64: 1>, scalar_prefetch = 0 : i64, scratch_operands = 0 : i64, tpu.core_type = #tpu.core_type<tc>, window_params = [{transform_indices = @transform_0, window_bounds = array<i64: 8, 128>}, {pipeline_mode = #tpu.pipeline_mode<synchronous>, transform_indices = @transform_1, window_bounds = array<i64: 16, 8>}, {pipeline_mode = #tpu.pipeline_mode<synchronous>, transform_indices = @transform_2, window_bounds = array<i64: 16, 1>}, {pipeline_mode = #tpu.pipeline_mode<synchronous>, transform_indices = @transform_3, window_bounds = array<i64: 24, 16>}, {pipeline_mode = #tpu.pipeline_mode<synchronous>, transform_indices = @transform_4, window_bounds = array<i64: 24, 1>}, {pipeline_mode = #tpu.pipeline_mode<synchronous>, transform_indices = @transform_5, window_bounds = array<i64: 32, 24>}, {pipeline_mode = #tpu.pipeline_mode<synchronous>, transform_indices = @transform_6, window_bounds = array<i64: 32, 1>}, {pipeline_mode = #tpu.pipeline_mode<synchronous>, transform_indices = @transform_7, window_bounds = array<i64: 36, 32>}, {pipeline_mode = #tpu.pipeline_mode<synchronous>, transform_indices = @transform_8, window_bounds = array<i64: 36, 1>}, {pipeline_mode = #tpu.pipeline_mode<synchronous>, transform_indices = @transform_9, window_bounds = array<i64: 6, 36>}, {pipeline_mode = #tpu.pipeline_mode<synchronous>, transform_indices = @transform_10, window_bounds = array<i64: 6, 1>}, {transform_indices = @transform_11, window_bounds = array<i64: 6, 128>}]} {
    %c0 = arith.constant 0 : index
    %c0_0 = arith.constant 0 : index
    %0 = vector.load %arg1[%c0, %c0_0] : memref<8x128xf32, #tpu.memory_space<vmem>>, vector<8x128xf32>
    %c0_1 = arith.constant 0 : index
    %c0_2 = arith.constant 0 : index
    %1 = vector.load %arg2[%c0_1, %c0_2] : memref<16x8xf32, #tpu.memory_space<vmem>>, vector<16x8xf32>
    %cst = arith.constant dense<0.000000e+00> : vector<16x128xf32>
    %2 = tpu.matmul %1, %0, %cst {dimension_numbers = #tpu.dot_dimension_numbers<[1], [0], [0], [1], [0, 0, 1, 1], [], []>} : vector<16x8xf32>, vector<8x128xf32>, vector<16x128xf32> -> vector<16x128xf32>
    %c0_3 = arith.constant 0 : index
    %c0_4 = arith.constant 0 : index
    %3 = vector.load %arg3[%c0_3, %c0_4] : memref<16x1xf32, #tpu.memory_space<vmem>>, vector<16x1xf32>
    %4 = vector.broadcast %3 : vector<16x1xf32> to vector<16x128xf32>
    %5 = arith.addf %2, %4 : vector<16x128xf32>
    %cst_5 = arith.constant 0.000000e+00 : f32
    %6 = vector.broadcast %cst_5 : f32 to vector<16x128xf32>
    %7 = arith.maximumf %5, %6 : vector<16x128xf32>
    %c0_6 = arith.constant 0 : index
    %c0_7 = arith.constant 0 : index
    %8 = vector.load %arg4[%c0_6, %c0_7] : memref<24x16xf32, #tpu.memory_space<vmem>>, vector<24x16xf32>
    %cst_8 = arith.constant dense<0.000000e+00> : vector<24x128xf32>
    %9 = tpu.matmul %8, %7, %cst_8 {dimension_numbers = #tpu.dot_dimension_numbers<[1], [0], [0], [1], [0, 0, 1, 1], [], []>} : vector<24x16xf32>, vector<16x128xf32>, vector<24x128xf32> -> vector<24x128xf32>
    %c0_9 = arith.constant 0 : index
    %c0_10 = arith.constant 0 : index
    %10 = vector.load %arg5[%c0_9, %c0_10] : memref<24x1xf32, #tpu.memory_space<vmem>>, vector<24x1xf32>
    %11 = vector.broadcast %10 : vector<24x1xf32> to vector<24x128xf32>
    %12 = arith.addf %9, %11 : vector<24x128xf32>
    %cst_11 = arith.constant 0.000000e+00 : f32
    %13 = vector.broadcast %cst_11 : f32 to vector<24x128xf32>
    %14 = arith.maximumf %12, %13 : vector<24x128xf32>
    %c0_12 = arith.constant 0 : index
    %c0_13 = arith.constant 0 : index
    %15 = vector.load %arg6[%c0_12, %c0_13] : memref<32x24xf32, #tpu.memory_space<vmem>>, vector<32x24xf32>
    %cst_14 = arith.constant dense<0.000000e+00> : vector<32x128xf32>
    %16 = tpu.matmul %15, %14, %cst_14 {dimension_numbers = #tpu.dot_dimension_numbers<[1], [0], [0], [1], [0, 0, 1, 1], [], []>} : vector<32x24xf32>, vector<24x128xf32>, vector<32x128xf32> -> vector<32x128xf32>
    %c0_15 = arith.constant 0 : index
    %c0_16 = arith.constant 0 : index
    %17 = vector.load %arg7[%c0_15, %c0_16] : memref<32x1xf32, #tpu.memory_space<vmem>>, vector<32x1xf32>
    %18 = vector.broadcast %17 : vector<32x1xf32> to vector<32x128xf32>
    %19 = arith.addf %16, %18 : vector<32x128xf32>
    %cst_17 = arith.constant 0.000000e+00 : f32
    %20 = vector.broadcast %cst_17 : f32 to vector<32x128xf32>
    %21 = arith.maximumf %19, %20 : vector<32x128xf32>
    %c0_18 = arith.constant 0 : index
    %c0_19 = arith.constant 0 : index
    %22 = vector.load %arg8[%c0_18, %c0_19] : memref<36x32xf32, #tpu.memory_space<vmem>>, vector<36x32xf32>
    %cst_20 = arith.constant dense<0.000000e+00> : vector<36x128xf32>
    %23 = tpu.matmul %22, %21, %cst_20 {dimension_numbers = #tpu.dot_dimension_numbers<[1], [0], [0], [1], [0, 0, 1, 1], [], []>} : vector<36x32xf32>, vector<32x128xf32>, vector<36x128xf32> -> vector<36x128xf32>
    %c0_21 = arith.constant 0 : index
    %c0_22 = arith.constant 0 : index
    %24 = vector.load %arg9[%c0_21, %c0_22] : memref<36x1xf32, #tpu.memory_space<vmem>>, vector<36x1xf32>
    %25 = vector.broadcast %24 : vector<36x1xf32> to vector<36x128xf32>
    %26 = arith.addf %23, %25 : vector<36x128xf32>
    %cst_23 = arith.constant 0.000000e+00 : f32
    %27 = vector.broadcast %cst_23 : f32 to vector<36x128xf32>
    %28 = arith.maximumf %26, %27 : vector<36x128xf32>
    %c0_24 = arith.constant 0 : index
    %c0_25 = arith.constant 0 : index
    %29 = vector.load %arg10[%c0_24, %c0_25] : memref<6x36xf32, #tpu.memory_space<vmem>>, vector<6x36xf32>
    %cst_26 = arith.constant dense<0.000000e+00> : vector<6x128xf32>
    %30 = tpu.matmul %29, %28, %cst_26 {dimension_numbers = #tpu.dot_dimension_numbers<[1], [0], [0], [1], [0, 0, 1, 1], [], []>} : vector<6x36xf32>, vector<36x128xf32>, vector<6x128xf32> -> vector<6x128xf32>
    %c0_27 = arith.constant 0 : index
    %c0_28 = arith.constant 0 : index
    %31 = vector.load %arg11[%c0_27, %c0_28] : memref<6x1xf32, #tpu.memory_space<vmem>>, vector<6x1xf32>
    %32 = vector.broadcast %31 : vector<6x1xf32> to vector<6x128xf32>
    %33 = arith.addf %30, %32 : vector<6x128xf32>
    %c0_29 = arith.constant 0 : index
    %c0_30 = arith.constant 0 : index
    %34 = vector.load %arg12[%c0_29, %c0_30] : memref<6x128xf32, #tpu.memory_space<vmem>>, vector<6x128xf32>
    tpu.vector_store %arg12[%c0_29, %c0_30], %33 {strides = array<i32>} : memref<6x128xf32, #tpu.memory_space<vmem>>, vector<6x128xf32>,
    return
  }
  func.func @transform_0(%arg0: i32) -> (i32, i32) {
    %c0_i32 = arith.constant 0 : i32
    %c0_i32_0 = arith.constant 0 : i32
    return %c0_i32, %arg0 : i32, i32
  }
  func.func @transform_1(%arg0: i32) -> (i32, i32) {
    %c0_i32 = arith.constant 0 : i32
    %c0_i32_0 = arith.constant 0 : i32
    %c0_i32_1 = arith.constant 0 : i32
    return %c0_i32, %c0_i32_0 : i32, i32
  }
  func.func @transform_2(%arg0: i32) -> (i32, i32) {
    %c0_i32 = arith.constant 0 : i32
    %c0_i32_0 = arith.constant 0 : i32
    %c0_i32_1 = arith.constant 0 : i32
    return %c0_i32, %c0_i32_0 : i32, i32
  }
  func.func @transform_3(%arg0: i32) -> (i32, i32) {
    %c0_i32 = arith.constant 0 : i32
    %c0_i32_0 = arith.constant 0 : i32
    %c0_i32_1 = arith.constant 0 : i32
    return %c0_i32, %c0_i32_0 : i32, i32
  }
  func.func @transform_4(%arg0: i32) -> (i32, i32) {
    %c0_i32 = arith.constant 0 : i32
    %c0_i32_0 = arith.constant 0 : i32
    %c0_i32_1 = arith.constant 0 : i32
    return %c0_i32, %c0_i32_0 : i32, i32
  }
  func.func @transform_5(%arg0: i32) -> (i32, i32) {
    %c0_i32 = arith.constant 0 : i32
    %c0_i32_0 = arith.constant 0 : i32
    %c0_i32_1 = arith.constant 0 : i32
    return %c0_i32, %c0_i32_0 : i32, i32
  }
  func.func @transform_6(%arg0: i32) -> (i32, i32) {
    %c0_i32 = arith.constant 0 : i32
    %c0_i32_0 = arith.constant 0 : i32
    %c0_i32_1 = arith.constant 0 : i32
    return %c0_i32, %c0_i32_0 : i32, i32
  }
  func.func @transform_7(%arg0: i32) -> (i32, i32) {
    %c0_i32 = arith.constant 0 : i32
    %c0_i32_0 = arith.constant 0 : i32
    %c0_i32_1 = arith.constant 0 : i32
    return %c0_i32, %c0_i32_0 : i32, i32
  }
  func.func @transform_8(%arg0: i32) -> (i32, i32) {
    %c0_i32 = arith.constant 0 : i32
    %c0_i32_0 = arith.constant 0 : i32
    %c0_i32_1 = arith.constant 0 : i32
    return %c0_i32, %c0_i32_0 : i32, i32
  }
  func.func @transform_9(%arg0: i32) -> (i32, i32) {
    %c0_i32 = arith.constant 0 : i32
    %c0_i32_0 = arith.constant 0 : i32
    %c0_i32_1 = arith.constant 0 : i32
    return %c0_i32, %c0_i32_0 : i32, i32
  }
  func.func @transform_10(%arg0: i32) -> (i32, i32) {
    %c0_i32 = arith.constant 0 : i32
    %c0_i32_0 = arith.constant 0 : i32
    %c0_i32_1 = arith.constant 0 : i32
    return %c0_i32, %c0_i32_0 : i32, i32
  }
  func.func @transform_11(%arg0: i32) -> (i32, i32) {
    %c0_i32 = arith.constant 0 : i32
    %c0_i32_0 = arith.constant 0 : i32
    return %c0_i32, %arg0 : i32, i32
  }
}

</mosaic_0001>

<llo_original>
// kernel: failure_type_prediction_forward.1
$region0: #{failure_type_prediction_forward.1}
  #allocation0 [shape = 'u32[]', space=smem, size = 0x4, offset = 0x4, fixed_abs, tag = 'smem constant byte address 0x4 - core index']
  #allocation1 [shape = 'u32[144,128]{1,0:T(1,128)}', space=vmem, size = 0x12000, scoped, tag = 'internal scratch']
  %s0 = inlined_call_operand.vmem [shape: f32[8,128], index: 0, kind: input, shape index: {}]
  %s1 = inlined_call_operand.vmem [shape: f32[16,8], index: 1, kind: input, shape index: {}]
  %s2 = inlined_call_operand.vmem [shape: f32[16,1], index: 2, kind: input, shape index: {}]
  %s3 = inlined_call_operand.vmem [shape: f32[24,16], index: 3, kind: input, shape index: {}]
  %s4 = inlined_call_operand.vmem [shape: f32[24,1], index: 4, kind: input, shape index: {}]
  %s5 = inlined_call_operand.vmem [shape: f32[32,24], index: 5, kind: input, shape index: {}]
  %s6 = inlined_call_operand.vmem [shape: f32[32,1], index: 6, kind: input, shape index: {}]
  %s7 = inlined_call_operand.vmem [shape: f32[36,32], index: 7, kind: input, shape index: {}]
  %s8 = inlined_call_operand.vmem [shape: f32[36,1], index: 8, kind: input, shape index: {}]
  %s9 = inlined_call_operand.vmem [shape: f32[6,36], index: 9, kind: input, shape index: {}]
  %s10 = inlined_call_operand.vmem [shape: f32[6,1], index: 10, kind: input, shape index: {}]
  %s11 = inlined_call_operand.hbm [shape: f32[6,128], index: 11, kind: output, shape index: {}]
  %s12 = sld [smem:[#allocation0]]
  $region54: #{failure_type_prediction_forward.1} parent=0
    _
  %s14 = ssub.s32 1, %s12
  %s15 = scalar_select 0, %s14, %s12
  $region1: #{failure_type_prediction_forward.1} parent=0
    #allocation2 [shape = 'u8[4096]{0}', space=vmem, size = 0x1000, scoped, tag = 'output window, operand 0, single buffered']
    #allocation3 [shape = 's32[1]{0}', space=sflag, size = 0x4, scoped, tag = 'scoped memory for failure_type_prediction_forward.1']
    %16 = vsyncpa [#allocation3], 0
    // Predicated region
    $region2: #{failure_type_prediction_forward.1} parent=1 // pred_check
      _
    $region3: #{failure_type_prediction_forward.1} parent=1 // pred_check_branch
      %18 = sbr.rel (0) target = $region5
    $region4: #{failure_type_prediction_forward.1} parent=1 // pred_region
      _
    $region5: #{failure_type_prediction_forward.1} parent=1 // pred_fallthru
      _
    // Predicated region
    $region6: #{failure_type_prediction_forward.1} parent=1 // pred_check
      _
    $region7: #{failure_type_prediction_forward.1} parent=1 // pred_check_branch
      %20 = sbr.rel (0) target = $region9
    $region8: #{failure_type_prediction_forward.1} parent=1 // pred_region
      _
    $region9: #{failure_type_prediction_forward.1} parent=1 // pred_fallthru
      _
    // Predicated region
    $region10: #{failure_type_prediction_forward.1} parent=1 // pred_check
      _
    $region11: #{failure_type_prediction_forward.1} parent=1 // pred_check_branch
      %22 = sbr.rel (0) target = $region13
    $region12: #{failure_type_prediction_forward.1} parent=1 // pred_region
      _
    $region13: #{failure_type_prediction_forward.1} parent=1 // pred_fallthru
      _
    // Predicated region
    $region14: #{failure_type_prediction_forward.1} parent=1 // pred_check
      _
    $region15: #{failure_type_prediction_forward.1} parent=1 // pred_check_branch
      %24 = sbr.rel (0) target = $region17
    $region16: #{failure_type_prediction_forward.1} parent=1 // pred_region
      _
    $region17: #{failure_type_prediction_forward.1} parent=1 // pred_fallthru
      _
    // Predicated region
    $region18: #{failure_type_prediction_forward.1} parent=1 // pred_check
      _
    $region19: #{failure_type_prediction_forward.1} parent=1 // pred_check_branch
      %26 = sbr.rel (0) target = $region21
    $region20: #{failure_type_prediction_forward.1} parent=1 // pred_region
      _
    $region21: #{failure_type_prediction_forward.1} parent=1 // pred_fallthru
      _
    // Predicated region
    $region22: #{failure_type_prediction_forward.1} parent=1 // pred_check
      _
    $region23: #{failure_type_prediction_forward.1} parent=1 // pred_check_branch
      %28 = sbr.rel (0) target = $region25
    $region24: #{failure_type_prediction_forward.1} parent=1 // pred_region
      _
    $region25: #{failure_type_prediction_forward.1} parent=1 // pred_fallthru
      _
    // Predicated region
    $region26: #{failure_type_prediction_forward.1} parent=1 // pred_check
      _
    $region27: #{failure_type_prediction_forward.1} parent=1 // pred_check_branch
      %30 = sbr.rel (0) target = $region29
    $region28: #{failure_type_prediction_forward.1} parent=1 // pred_region
      _
    $region29: #{failure_type_prediction_forward.1} parent=1 // pred_fallthru
      _
    // Predicated region
    $region30: #{failure_type_prediction_forward.1} parent=1 // pred_check
      _
    $region31: #{failure_type_prediction_forward.1} parent=1 // pred_check_branch
      %32 = sbr.rel (0) target = $region33
    $region32: #{failure_type_prediction_forward.1} parent=1 // pred_region
      _
    $region33: #{failure_type_prediction_forward.1} parent=1 // pred_fallthru
      _
    // Predicated region
    $region34: #{failure_type_prediction_forward.1} parent=1 // pred_check
      _
    $region35: #{failure_type_prediction_forward.1} parent=1 // pred_check_branch
      %34 = sbr.rel (0) target = $region37
    $region36: #{failure_type_prediction_forward.1} parent=1 // pred_region
      _
    $region37: #{failure_type_prediction_forward.1} parent=1 // pred_fallthru
      _
    // Predicated region
    $region38: #{failure_type_prediction_forward.1} parent=1 // pred_check
      _
    $region39: #{failure_type_prediction_forward.1} parent=1 // pred_check_branch
      %36 = sbr.rel (0) target = $region41
    $region40: #{failure_type_prediction_forward.1} parent=1 // pred_region
      _
    $region41: #{failure_type_prediction_forward.1} parent=1 // pred_fallthru
      _
    // Predicated region
    $region42: #{failure_type_prediction_forward.1} parent=1 // pred_check
      _
    $region43: #{failure_type_prediction_forward.1} parent=1 // pred_check_branch
      %38 = sbr.rel (0) target = $region45
    $region44: #{failure_type_prediction_forward.1} parent=1 // pred_region
      _
    $region45: #{failure_type_prediction_forward.1} parent=1 // pred_fallthru
      _
    %v39 = vld [vmem:[%s0] sm:$0xff]
    %v40 = vld [vmem:[%s1] sm:$0xff]
    %v41 = vld [vmem:[%s1 + $0x8] sm:$0xff]
    %v42 = vld [vmem:[%s2] sm:$0xff]
    %v43 = vld [vmem:[%s2 + $0x8] sm:$0xff]
    %45 = vset.pattern.permute.xlu0 0
    %46 = vperm.xlu0 %45, %v42
    %v47 = vpop.permute.xlu0 %46
    %50 = vset.pattern.permute.xlu0 0
    %51 = vperm.xlu0 %50, %v43
    %v52 = vpop.permute.xlu0 %51
    %vm54 = vcmask 64512
    %v56 = vsel %vm54, %v40, 0
    %v59 = vsel %vm54, %v41, 0
    %61 = vmatprep.subr.mxu0 0.0
    %62 = vmatpush1.msra.mxu0 0.0
    %63 = vmatprep.subr.mxu0 0.0
    %64 = vmatpush1.msra.mxu0 0.0
    %65 = vmatprep.subr.mxu0 0.0
    %66 = vmatpush1.msra.mxu0 0.0
    %67 = vmatprep.subr.mxu0 0.0
    %68 = vmatpush1.msra.mxu0 0.0
    %69 = vmatprep.subr.mxu0 0.0
    %70 = vmatpush1.msra.mxu0 0.0
    %71 = vmatprep.subr.mxu0 0.0
    %72 = vmatpush1.msra.mxu0 0.0
    %73 = vmatprep.subr.mxu0 0.0
    %74 = vmatpush1.msra.mxu0 0.0
    %75 = vmatprep.subr.mxu0 0.0
    %76 = vmatpush1.msra.mxu0 0.0
    %77 = vmatprep.subr.mxu0 0.0
    %78 = vmatpush1.msra.mxu0 0.0
    %79 = vmatprep.subr.mxu0 0.0
    %80 = vmatpush1.msra.mxu0 0.0
    %81 = vmatprep.subr.mxu0 0.0
    %82 = vmatpush1.msra.mxu0 0.0
    %83 = vmatprep.subr.mxu0 0.0
    %84 = vmatpush1.msra.mxu0 0.0
    %85 = vmatprep.subr.mxu0 0.0
    %86 = vmatpush1.msra.mxu0 0.0
    %87 = vmatprep.subr.mxu0 0.0
    %88 = vmatpush1.msra.mxu0 0.0
    %89 = vmatprep.subr.mxu0 0.0
    %90 = vmatpush1.msra.mxu0 0.0
    %91 = vmatprep.subr.mxu0 0.0
    %92 = vmatpush1.msra.mxu0 %v39
    %93 = vmatprep.subr.mxu0 0.0
    %94 = vmatpush2.msra.mxu0 0.0
    %95 = vmatprep.subr.mxu0 0.0
    %96 = vmatpush2.msra.mxu0 0.0
    %97 = vmatprep.subr.mxu0 0.0
    %98 = vmatpush2.msra.mxu0 0.0
    %99 = vmatprep.subr.mxu0 0.0
    %100 = vmatpush2.msra.mxu0 0.0
    %101 = vmatprep.subr.mxu0 0.0
    %102 = vmatpush2.msra.mxu0 0.0
    %103 = vmatprep.subr.mxu0 0.0
    %104 = vmatpush2.msra.mxu0 0.0
    %105 = vmatprep.subr.mxu0 0.0
    %106 = vmatpush2.msra.mxu0 0.0
    %107 = vmatprep.subr.mxu0 0.0
    %108 = vmatpush2.msra.mxu0 0.0
    %109 = vmatprep.subr.mxu0 0.0
    %110 = vmatpush2.msra.mxu0 0.0
    %111 = vmatprep.subr.mxu0 0.0
    %112 = vmatpush2.msra.mxu0 0.0
    %113 = vmatprep.subr.mxu0 0.0
    %114 = vmatpush2.msra.mxu0 0.0
    %115 = vmatprep.subr.mxu0 0.0
    %116 = vmatpush2.msra.mxu0 0.0
    %117 = vmatprep.subr.mxu0 0.0
    %118 = vmatpush2.msra.mxu0 0.0
    %119 = vmatprep.subr.mxu0 0.0
    %120 = vmatpush2.msra.mxu0 0.0
    %121 = vmatprep.subr.mxu0 0.0
    %122 = vmatpush2.msra.mxu0 0.0
    %123 = vmatprep.subr.mxu0 0.0
    %124 = vmatpush2.msra.mxu0 0.0
    %125 = vmatprep.mubr.f32.mxu0 0.0
    %126 = vmatmul.mubr.f32.gmra.mxu0 %v56
    %v127 = vpop.f32.mrf.mxu0
    %v128 = vadd.f32 %v47, %v127
    %v129 = vpop.f32.mrf.mxu0
    %130 = vmatprep.mubr.f32.mxu0 0.0
    %131 = vmatmul.mubr.f32.gmra.mxu0 %v59
    %v132 = vpop.f32.mrf.mxu0
    %v133 = vadd.f32 %v52, %v132
    %v134 = vpop.f32.mrf.mxu0
    %135 = vdwg.mxu0
    %v136 = vmax.f32 %v128, 0.0
    %v137 = vmax.f32 %v133, 0.0
    %v138 = vld [vmem:[%s3] sm:$0xff]
    %v139 = vld [vmem:[%s3 + $0x8] sm:$0xff]
    %v140 = vld [vmem:[%s3 + $0x10] sm:$0xff]
    %v141 = vld [vmem:[%s4] sm:$0xff]
    %v142 = vld [vmem:[%s4 + $0x8] sm:$0xff]
    %v143 = vld [vmem:[%s4 + $0x10] sm:$0xff]
    %145 = vset.pattern.permute.xlu0 0
    %146 = vperm.xlu0 %145, %v141
    %v147 = vpop.permute.xlu0 %146
    %150 = vset.pattern.permute.xlu0 0
    %151 = vperm.xlu0 %150, %v142
    %v152 = vpop.permute.xlu0 %151
    %155 = vset.pattern.permute.xlu0 0
    %156 = vperm.xlu0 %155, %v143
    %v157 = vpop.permute.xlu0 %156
    %vm159 = vcmask 130048
    %v161 = vsel %vm159, %v138, 0
    %v164 = vsel %vm159, %v139, 0
    %v167 = vsel %vm159, %v140, 0
    %169 = vmatprep.subr.mxu0 0.0
    %170 = vmatpush1.msra.mxu0 0.0
    %171 = vmatprep.subr.mxu0 0.0
    %172 = vmatpush1.msra.mxu0 0.0
    %173 = vmatprep.subr.mxu0 0.0
    %174 = vmatpush1.msra.mxu0 0.0
    %175 = vmatprep.subr.mxu0 0.0
    %176 = vmatpush1.msra.mxu0 0.0
    %177 = vmatprep.subr.mxu0 0.0
    %178 = vmatpush1.msra.mxu0 0.0
    %179 = vmatprep.subr.mxu0 0.0
    %180 = vmatpush1.msra.mxu0 0.0
    %181 = vmatprep.subr.mxu0 0.0
    %182 = vmatpush1.msra.mxu0 0.0
    %183 = vmatprep.subr.mxu0 0.0
    %184 = vmatpush1.msra.mxu0 0.0
    %185 = vmatprep.subr.mxu0 0.0
    %186 = vmatpush1.msra.mxu0 0.0
    %187 = vmatprep.subr.mxu0 0.0
    %188 = vmatpush1.msra.mxu0 0.0
    %189 = vmatprep.subr.mxu0 0.0
    %190 = vmatpush1.msra.mxu0 0.0
    %191 = vmatprep.subr.mxu0 0.0
    %192 = vmatpush1.msra.mxu0 0.0
    %193 = vmatprep.subr.mxu0 0.0
    %194 = vmatpush1.msra.mxu0 0.0
    %195 = vmatprep.subr.mxu0 0.0
    %196 = vmatpush1.msra.mxu0 0.0
    %197 = vmatprep.subr.mxu0 0.0
    %198 = vmatpush1.msra.mxu0 %v137
    %199 = vmatprep.subr.mxu0 0.0
    %200 = vmatpush1.msra.mxu0 %v136
    %201 = vmatprep.subr.mxu0 0.0
    %202 = vmatpush2.msra.mxu0 0.0
    %203 = vmatprep.subr.mxu0 0.0
    %204 = vmatpush2.msra.mxu0 0.0
    %205 = vmatprep.subr.mxu0 0.0
    %206 = vmatpush2.msra.mxu0 0.0
    %207 = vmatprep.subr.mxu0 0.0
    %208 = vmatpush2.msra.mxu0 0.0
    %209 = vmatprep.subr.mxu0 0.0
    %210 = vmatpush2.msra.mxu0 0.0
    %211 = vmatprep.subr.mxu0 0.0
    %212 = vmatpush2.msra.mxu0 0.0
    %213 = vmatprep.subr.mxu0 0.0
    %214 = vmatpush2.msra.mxu0 0.0
    %215 = vmatprep.subr.mxu0 0.0
    %216 = vmatpush2.msra.mxu0 0.0
    %217 = vmatprep.subr.mxu0 0.0
    %218 = vmatpush2.msra.mxu0 0.0
    %219 = vmatprep.subr.mxu0 0.0
    %220 = vmatpush2.msra.mxu0 0.0
    %221 = vmatprep.subr.mxu0 0.0
    %222 = vmatpush2.msra.mxu0 0.0
    %223 = vmatprep.subr.mxu0 0.0
    %224 = vmatpush2.msra.mxu0 0.0
    %225 = vmatprep.subr.mxu0 0.0
    %226 = vmatpush2.msra.mxu0 0.0
    %227 = vmatprep.subr.mxu0 0.0
    %228 = vmatpush2.msra.mxu0 0.0
    %229 = vmatprep.subr.mxu0 0.0
    %230 = vmatpush2.msra.mxu0 0.0
    %231 = vmatprep.subr.mxu0 0.0
    %232 = vmatpush2.msra.mxu0 0.0
    %233 = vmatprep.mubr.f32.mxu0 0.0
    %234 = vmatmul.mubr.f32.gmra.mxu0 %v161
    %v235 = vpop.f32.mrf.mxu0
    %v236 = vadd.f32 %v147, %v235
    %v237 = vpop.f32.mrf.mxu0
    %238 = vmatprep.mubr.f32.mxu0 0.0
    %239 = vmatmul.mubr.f32.gmra.mxu0 %v164
    %v240 = vpop.f32.mrf.mxu0
    %v241 = vadd.f32 %v152, %v240
    %v242 = vpop.f32.mrf.mxu0
    %243 = vmatprep.mubr.f32.mxu0 0.0
    %244 = vmatmul.mubr.f32.gmra.mxu0 %v167
    %v245 = vpop.f32.mrf.mxu0
    %v246 = vadd.f32 %v157, %v245
    %v247 = vpop.f32.mrf.mxu0
    %248 = vdwg.mxu0
    %v249 = vmax.f32 %v236, 0.0
    %v250 = vmax.f32 %v241, 0.0
    %v251 = vmax.f32 %v246, 0.0
    %v252 = vld [vmem:[%s5] sm:$0xff]
    %v253 = vld [vmem:[%s5 + $0x8] sm:$0xff]
    %v254 = vld [vmem:[%s5 + $0x10] sm:$0xff]
    %v255 = vld [vmem:[%s5 + $0x18] sm:$0xff]
    %v256 = vld [vmem:[%s6] sm:$0xff]
    %v257 = vld [vmem:[%s6 + $0x8] sm:$0xff]
    %v258 = vld [vmem:[%s6 + $0x10] sm:$0xff]
    %v259 = vld [vmem:[%s6 + $0x18] sm:$0xff]
    %261 = vset.pattern.permute.xlu0 0
    %262 = vperm.xlu0 %261, %v256
    %v263 = vpop.permute.xlu0 %262
    %266 = vset.pattern.permute.xlu0 0
    %267 = vperm.xlu0 %266, %v257
    %v268 = vpop.permute.xlu0 %267
    %271 = vset.pattern.permute.xlu0 0
    %272 = vperm.xlu0 %271, %v258
    %v273 = vpop.permute.xlu0 %272
    %276 = vset.pattern.permute.xlu0 0
    %277 = vperm.xlu0 %276, %v259
    %v278 = vpop.permute.xlu0 %277
    %vm280 = vcmask 195584
    %v282 = vsel %vm280, %v252, 0
    %v285 = vsel %vm280, %v253, 0
    %v288 = vsel %vm280, %v254, 0
    %v291 = vsel %vm280, %v255, 0
    %293 = vmatprep.subr.mxu0 0.0
    %294 = vmatpush1.msra.mxu0 0.0
    %295 = vmatprep.subr.mxu0 0.0
    %296 = vmatpush1.msra.mxu0 0.0
    %297 = vmatprep.subr.mxu0 0.0
    %298 = vmatpush1.msra.mxu0 0.0
    %299 = vmatprep.subr.mxu0 0.0
    %300 = vmatpush1.msra.mxu0 0.0
    %301 = vmatprep.subr.mxu0 0.0
    %302 = vmatpush1.msra.mxu0 0.0
    %303 = vmatprep.subr.mxu0 0.0
    %304 = vmatpush1.msra.mxu0 0.0
    %305 = vmatprep.subr.mxu0 0.0
    %306 = vmatpush1.msra.mxu0 0.0
    %307 = vmatprep.subr.mxu0 0.0
    %308 = vmatpush1.msra.mxu0 0.0
    %309 = vmatprep.subr.mxu0 0.0
    %310 = vmatpush1.msra.mxu0 0.0
    %311 = vmatprep.subr.mxu0 0.0
    %312 = vmatpush1.msra.mxu0 0.0
    %313 = vmatprep.subr.mxu0 0.0
    %314 = vmatpush1.msra.mxu0 0.0
    %315 = vmatprep.subr.mxu0 0.0
    %316 = vmatpush1.msra.mxu0 0.0
    %317 = vmatprep.subr.mxu0 0.0
    %318 = vmatpush1.msra.mxu0 0.0
    %319 = vmatprep.subr.mxu0 0.0
    %320 = vmatpush1.msra.mxu0 %v251
    %321 = vmatprep.subr.mxu0 0.0
    %322 = vmatpush1.msra.mxu0 %v250
    %323 = vmatprep.subr.mxu0 0.0
    %324 = vmatpush1.msra.mxu0 %v249
    %325 = vmatprep.subr.mxu0 0.0
    %326 = vmatpush2.msra.mxu0 0.0
    %327 = vmatprep.subr.mxu0 0.0
    %328 = vmatpush2.msra.mxu0 0.0
    %329 = vmatprep.subr.mxu0 0.0
    %330 = vmatpush2.msra.mxu0 0.0
    %331 = vmatprep.subr.mxu0 0.0
    %332 = vmatpush2.msra.mxu0 0.0
    %333 = vmatprep.subr.mxu0 0.0
    %334 = vmatpush2.msra.mxu0 0.0
    %335 = vmatprep.subr.mxu0 0.0
    %336 = vmatpush2.msra.mxu0 0.0
    %337 = vmatprep.subr.mxu0 0.0
    %338 = vmatpush2.msra.mxu0 0.0
    %339 = vmatprep.subr.mxu0 0.0
    %340 = vmatpush2.msra.mxu0 0.0
    %341 = vmatprep.subr.mxu0 0.0
    %342 = vmatpush2.msra.mxu0 0.0
    %343 = vmatprep.subr.mxu0 0.0
    %344 = vmatpush2.msra.mxu0 0.0
    %345 = vmatprep.subr.mxu0 0.0
    %346 = vmatpush2.msra.mxu0 0.0
    %347 = vmatprep.subr.mxu0 0.0
    %348 = vmatpush2.msra.mxu0 0.0
    %349 = vmatprep.subr.mxu0 0.0
    %350 = vmatpush2.msra.mxu0 0.0
    %351 = vmatprep.subr.mxu0 0.0
    %352 = vmatpush2.msra.mxu0 0.0
    %353 = vmatprep.subr.mxu0 0.0
    %354 = vmatpush2.msra.mxu0 0.0
    %355 = vmatprep.subr.mxu0 0.0
    %356 = vmatpush2.msra.mxu0 0.0
    %357 = vmatprep.mubr.f32.mxu0 0.0
    %358 = vmatmul.mubr.f32.gmra.mxu0 %v282
    %v359 = vpop.f32.mrf.mxu0
    %v360 = vadd.f32 %v263, %v359
    %v361 = vpop.f32.mrf.mxu0
    %362 = vmatprep.mubr.f32.mxu0 0.0
    %363 = vmatmul.mubr.f32.gmra.mxu0 %v285
    %v364 = vpop.f32.mrf.mxu0
    %v365 = vadd.f32 %v268, %v364
    %v366 = vpop.f32.mrf.mxu0
    %367 = vmatprep.mubr.f32.mxu0 0.0
    %368 = vmatmul.mubr.f32.gmra.mxu0 %v288
    %v369 = vpop.f32.mrf.mxu0
    %v370 = vadd.f32 %v273, %v369
    %v371 = vpop.f32.mrf.mxu0
    %372 = vmatprep.mubr.f32.mxu0 0.0
    %373 = vmatmul.mubr.f32.gmra.mxu0 %v291
    %v374 = vpop.f32.mrf.mxu0
    %v375 = vadd.f32 %v278, %v374
    %v376 = vpop.f32.mrf.mxu0
    %377 = vdwg.mxu0
    %v378 = vmax.f32 %v360, 0.0
    %v379 = vmax.f32 %v365, 0.0
    %v380 = vmax.f32 %v370, 0.0
    %v381 = vmax.f32 %v375, 0.0
    %v382 = vld [vmem:[%s7] sm:$0xff]
    %v383 = vld [vmem:[%s7 + $0x8] sm:$0xff]
    %v384 = vld [vmem:[%s7 + $0x10] sm:$0xff]
    %v385 = vld [vmem:[%s7 + $0x18] sm:$0xff]
    %v386 = vld [vmem:[%s7 + $0x20] sm:$0xf]
    %v387 = vld [vmem:[%s8] sm:$0xff]
    %v388 = vld [vmem:[%s8 + $0x8] sm:$0xff]
    %v389 = vld [vmem:[%s8 + $0x10] sm:$0xff]
    %v390 = vld [vmem:[%s8 + $0x18] sm:$0xff]
    %v391 = vld [vmem:[%s8 + $0x20] sm:$0xf]
    %393 = vset.pattern.permute.xlu0 0
    %394 = vperm.xlu0 %393, %v387
    %v395 = vpop.permute.xlu0 %394
    %398 = vset.pattern.permute.xlu0 0
    %399 = vperm.xlu0 %398, %v388
    %v400 = vpop.permute.xlu0 %399
    %403 = vset.pattern.permute.xlu0 0
    %404 = vperm.xlu0 %403, %v389
    %v405 = vpop.permute.xlu0 %404
    %408 = vset.pattern.permute.xlu0 0
    %409 = vperm.xlu0 %408, %v390
    %v410 = vpop.permute.xlu0 %409
    %413 = vset.pattern.permute.xlu0 0
    %414 = vperm.xlu0 %413, %v391
    %v415 = vpop.permute.xlu0 %414
    %vm417 = vcmask 261120
    %v419 = vsel %vm417, %v382, 0
    %v422 = vsel %vm417, %v383, 0
    %v425 = vsel %vm417, %v384, 0
    %v428 = vsel %vm417, %v385, 0
    %v431 = vsel %vm417, %v386, 0
    %433 = vmatprep.subr.mxu0 0.0
    %434 = vmatpush1.msra.mxu0 0.0
    %435 = vmatprep.subr.mxu0 0.0
    %436 = vmatpush1.msra.mxu0 0.0
    %437 = vmatprep.subr.mxu0 0.0
    %438 = vmatpush1.msra.mxu0 0.0
    %439 = vmatprep.subr.mxu0 0.0
    %440 = vmatpush1.msra.mxu0 0.0
    %441 = vmatprep.subr.mxu0 0.0
    %442 = vmatpush1.msra.mxu0 0.0
    %443 = vmatprep.subr.mxu0 0.0
    %444 = vmatpush1.msra.mxu0 0.0
    %445 = vmatprep.subr.mxu0 0.0
    %446 = vmatpush1.msra.mxu0 0.0
    %447 = vmatprep.subr.mxu0 0.0
    %448 = vmatpush1.msra.mxu0 0.0
    %449 = vmatprep.subr.mxu0 0.0
    %450 = vmatpush1.msra.mxu0 0.0
    %451 = vmatprep.subr.mxu0 0.0
    %452 = vmatpush1.msra.mxu0 0.0
    %453 = vmatprep.subr.mxu0 0.0
    %454 = vmatpush1.msra.mxu0 0.0
    %455 = vmatprep.subr.mxu0 0.0
    %456 = vmatpush1.msra.mxu0 0.0
    %457 = vmatprep.subr.mxu0 0.0
    %458 = vmatpush1.msra.mxu0 %v381
    %459 = vmatprep.subr.mxu0 0.0
    %460 = vmatpush1.msra.mxu0 %v380
    %461 = vmatprep.subr.mxu0 0.0
    %462 = vmatpush1.msra.mxu0 %v379
    %463 = vmatprep.subr.mxu0 0.0
    %464 = vmatpush1.msra.mxu0 %v378
    %465 = vmatprep.subr.mxu0 0.0
    %466 = vmatpush2.msra.mxu0 0.0
    %467 = vmatprep.subr.mxu0 0.0
    %468 = vmatpush2.msra.mxu0 0.0
    %469 = vmatprep.subr.mxu0 0.0
    %470 = vmatpush2.msra.mxu0 0.0
    %471 = vmatprep.subr.mxu0 0.0
    %472 = vmatpush2.msra.mxu0 0.0
    %473 = vmatprep.subr.mxu0 0.0
    %474 = vmatpush2.msra.mxu0 0.0
    %475 = vmatprep.subr.mxu0 0.0
    %476 = vmatpush2.msra.mxu0 0.0
    %477 = vmatprep.subr.mxu0 0.0
    %478 = vmatpush2.msra.mxu0 0.0
    %479 = vmatprep.subr.mxu0 0.0
    %480 = vmatpush2.msra.mxu0 0.0
    %481 = vmatprep.subr.mxu0 0.0
    %482 = vmatpush2.msra.mxu0 0.0
    %483 = vmatprep.subr.mxu0 0.0
    %484 = vmatpush2.msra.mxu0 0.0
    %485 = vmatprep.subr.mxu0 0.0
    %486 = vmatpush2.msra.mxu0 0.0
    %487 = vmatprep.subr.mxu0 0.0
    %488 = vmatpush2.msra.mxu0 0.0
    %489 = vmatprep.subr.mxu0 0.0
    %490 = vmatpush2.msra.mxu0 0.0
    %491 = vmatprep.subr.mxu0 0.0
    %492 = vmatpush2.msra.mxu0 0.0
    %493 = vmatprep.subr.mxu0 0.0
    %494 = vmatpush2.msra.mxu0 0.0
    %495 = vmatprep.subr.mxu0 0.0
    %496 = vmatpush2.msra.mxu0 0.0
    %497 = vmatprep.mubr.f32.mxu0 0.0
    %498 = vmatmul.mubr.f32.gmra.mxu0 %v419
    %v499 = vpop.f32.mrf.mxu0
    %v500 = vadd.f32 %v395, %v499
    %v501 = vpop.f32.mrf.mxu0
    %502 = vmatprep.mubr.f32.mxu0 0.0
    %503 = vmatmul.mubr.f32.gmra.mxu0 %v422
    %v504 = vpop.f32.mrf.mxu0
    %v505 = vadd.f32 %v400, %v504
    %v506 = vpop.f32.mrf.mxu0
    %507 = vmatprep.mubr.f32.mxu0 0.0
    %508 = vmatmul.mubr.f32.gmra.mxu0 %v425
    %v509 = vpop.f32.mrf.mxu0
    %v510 = vadd.f32 %v405, %v509
    %v511 = vpop.f32.mrf.mxu0
    %512 = vmatprep.mubr.f32.mxu0 0.0
    %513 = vmatmul.mubr.f32.gmra.mxu0 %v428
    %v514 = vpop.f32.mrf.mxu0
    %v515 = vadd.f32 %v410, %v514
    %v516 = vpop.f32.mrf.mxu0
    %517 = vmatprep.mubr.f32.mxu0 0.0
    %518 = vmatmul.mubr.f32.gmra.mxu0 %v431
    %v519 = vpop.f32.mrf.mxu0
    %v520 = vadd.f32 %v415, %v519
    %v521 = vpop.f32.mrf.mxu0
    %522 = vdwg.mxu0
    %v523 = vmax.f32 %v500, 0.0
    %v524 = vmax.f32 %v505, 0.0
    %v525 = vmax.f32 %v510, 0.0
    %v526 = vmax.f32 %v515, 0.0
    %v527 = vmax.f32 %v520, 0.0
    %v528 = vld [vmem:[%s9] sm:$0x3f]
    %v529 = vld [vmem:[%s10] sm:$0x3f]
    %531 = vset.pattern.permute.xlu0 0
    %532 = vperm.xlu0 %531, %v529
    %v533 = vpop.permute.xlu0 %532
    %vm535 = vcmask 293888
    %v537 = vsel %vm535, %v528, 0
    %vm539 = vcmask 1043456
    %v541 = vsel %vm539, %v527, 0
    %543 = vmatprep.subr.mxu0 0.0
    %544 = vmatpush1.msra.mxu0 0.0
    %545 = vmatprep.subr.mxu0 0.0
    %546 = vmatpush1.msra.mxu0 0.0
    %547 = vmatprep.subr.mxu0 0.0
    %548 = vmatpush1.msra.mxu0 0.0
    %549 = vmatprep.subr.mxu0 0.0
    %550 = vmatpush1.msra.mxu0 0.0
    %551 = vmatprep.subr.mxu0 0.0
    %552 = vmatpush1.msra.mxu0 0.0
    %553 = vmatprep.subr.mxu0 0.0
    %554 = vmatpush1.msra.mxu0 0.0
    %555 = vmatprep.subr.mxu0 0.0
    %556 = vmatpush1.msra.mxu0 0.0
    %557 = vmatprep.subr.mxu0 0.0
    %558 = vmatpush1.msra.mxu0 0.0
    %559 = vmatprep.subr.mxu0 0.0
    %560 = vmatpush1.msra.mxu0 0.0
    %561 = vmatprep.subr.mxu0 0.0
    %562 = vmatpush1.msra.mxu0 0.0
    %563 = vmatprep.subr.mxu0 0.0
    %564 = vmatpush1.msra.mxu0 0.0
    %565 = vmatprep.subr.mxu0 0.0
    %566 = vmatpush1.msra.mxu0 %v541
    %567 = vmatprep.subr.mxu0 0.0
    %568 = vmatpush1.msra.mxu0 %v526
    %569 = vmatprep.subr.mxu0 0.0
    %570 = vmatpush1.msra.mxu0 %v525
    %571 = vmatprep.subr.mxu0 0.0
    %572 = vmatpush1.msra.mxu0 %v524
    %573 = vmatprep.subr.mxu0 0.0
    %574 = vmatpush1.msra.mxu0 %v523
    %575 = vmatprep.subr.mxu0 0.0
    %576 = vmatpush2.msra.mxu0 0.0
    %577 = vmatprep.subr.mxu0 0.0
    %578 = vmatpush2.msra.mxu0 0.0
    %579 = vmatprep.subr.mxu0 0.0
    %580 = vmatpush2.msra.mxu0 0.0
    %581 = vmatprep.subr.mxu0 0.0
    %582 = vmatpush2.msra.mxu0 0.0
    %583 = vmatprep.subr.mxu0 0.0
    %584 = vmatpush2.msra.mxu0 0.0
    %585 = vmatprep.subr.mxu0 0.0
    %586 = vmatpush2.msra.mxu0 0.0
    %587 = vmatprep.subr.mxu0 0.0
    %588 = vmatpush2.msra.mxu0 0.0
    %589 = vmatprep.subr.mxu0 0.0
    %590 = vmatpush2.msra.mxu0 0.0
    %591 = vmatprep.subr.mxu0 0.0
    %592 = vmatpush2.msra.mxu0 0.0
    %593 = vmatprep.subr.mxu0 0.0
    %594 = vmatpush2.msra.mxu0 0.0
    %595 = vmatprep.subr.mxu0 0.0
    %596 = vmatpush2.msra.mxu0 0.0
    %597 = vmatprep.subr.mxu0 0.0
    %598 = vmatpush2.msra.mxu0 0.0
    %599 = vmatprep.subr.mxu0 0.0
    %600 = vmatpush2.msra.mxu0 0.0
    %601 = vmatprep.subr.mxu0 0.0
    %602 = vmatpush2.msra.mxu0 0.0
    %603 = vmatprep.subr.mxu0 0.0
    %604 = vmatpush2.msra.mxu0 0.0
    %605 = vmatprep.subr.mxu0 0.0
    %606 = vmatpush2.msra.mxu0 0.0
    %607 = vmatprep.mubr.f32.mxu0 0.0
    %608 = vmatmul.mubr.f32.gmra.mxu0 %v537
    %v609 = vpop.f32.mrf.mxu0
    %v610 = vadd.f32 %v533, %v609
    %v611 = vpop.f32.mrf.mxu0
    %612 = vdwg.mxu0
    %613 = vst [vmem:[#allocation2] sm:$0x3f] %v610
    // Predicated region
    $region46: #{failure_type_prediction_forward.1} parent=1 // pred_check
      _
    $region47: #{failure_type_prediction_forward.1} parent=1 // pred_check_branch
      %615 = sbr.rel (0) target = $region49
    $region48: #{failure_type_prediction_forward.1} parent=1 // pred_region
      %s617 = ssub.s32 128, 128
      %618 = vsyncadd [#allocation3], %s617
      %s620 = sshll.u32 [#allocation2], 4
      %s621 = int_to_ptr.vmem [resolvable:$true] %s620
      %623 = dma.vmem_to_hbm [thread:$0]  %s621, 128, %s11, [#allocation3]
    $region49: #{failure_type_prediction_forward.1} parent=1 // pred_fallthru
      _
    // Predicated region
    $region50: #{failure_type_prediction_forward.1} parent=1 // pred_check
      _
    $region51: #{failure_type_prediction_forward.1} parent=1 // pred_check_branch
      %625 = sbr.rel (0) target = $region53
    $region52: #{failure_type_prediction_forward.1} parent=1 // pred_region
      %626 = dma.done [#allocation3], 128
    $region53: #{failure_type_prediction_forward.1} parent=1 // pred_fallthru
      _
    %627 = vsyncpa [#allocation3], 1

</llo_original>
